<compile_context>
chip_gen: v5e
topology: v5e:2x2
jax: 0.10.0
libtpu: 0.0.40
codegen_flags: <defaults>
</compile_context>

<pallas_src>
import numpy as np
import jax
import jax.numpy as jnp
from jax import lax
from jax.experimental import pallas as pl
from jax.experimental.pallas import tpu as pltpu

_PRECISION = lax.Precision.HIGHEST   # only on the 4 small real dots


# ---------------------------------------------------------------------------
# One-time probe of pltpu.roll's rotate direction (robust across jax versions).
#   +1 -> pltpu.roll(x, s)[i] == x[(i - s) % n]   (jnp.roll convention)
#   -1 -> pltpu.roll(x, s)[i] == x[(i + s) % n]
# ---------------------------------------------------------------------------
_ROLL_SIGN = None


def _roll_sign():
    global _ROLL_SIGN
    if _ROLL_SIGN is None:
        def probe(x_ref, o_ref):
            o_ref[...] = pltpu.roll(x_ref[...], 1, axis=1)
        x = jnp.tile(jnp.arange(128, dtype=jnp.float32)[None, :], (8, 1))
        y = pl.pallas_call(
            probe, out_shape=jax.ShapeDtypeStruct((8, 128), jnp.float32))(x)
        _ROLL_SIGN = -1 if float(y[0, 0]) == 1.0 else 1
    return _ROLL_SIGN


# ---------------------------------------------------------------------------
# Small structural constants (O(P) masks + one (L, L/4) pool gather), host-built.
# ---------------------------------------------------------------------------
def _conv_boundary_masks(h, w, nb):
    """(9, 1, nb*h*w) 0/1 masks: mask[k,0,col]=1 iff tap k=(kh*3+kw) of output
    pixel `col` samples an in-bounds input pixel under SAME (pad=1) conv."""
    p = h * w
    m = np.zeros((9, 1, nb * p), np.float32)
    for kh in range(3):
        for kw in range(3):
            ys = np.arange(h) + kh - 1
            xs = np.arange(w) + kw - 1
            valid = np.outer(((ys >= 0) & (ys < h)).astype(np.float32),
                             ((xs >= 0) & (xs < w)).astype(np.float32))
            m[kh * 3 + kw, 0] = np.tile(valid.reshape(-1), nb)
    return jnp.asarray(m)


def _pool_select_matrix(h, w, nb):
    """(nb*h*w, nb*(h//2)*(w//2)) 0/1 gather: column (img,yo,xo) selects the
    even/even anchor (img, 2yo, 2xo).  Exactly one 1 per column -> exact."""
    ho, wo = h // 2, w // 2
    p, po = h * w, ho * wo
    s = np.zeros((nb * p, nb * po), np.float32)
    for img in range(nb):
        for yo in range(ho):
            for xo in range(wo):
                s[img * p + (2 * yo) * w + 2 * xo, img * po + yo * wo + xo] = 1.0
    return jnp.asarray(s)


def _prep_im2col_weight(w_hwio, cin_padded):
    """HWIO (3,3,Cin,Cout) -> (Cout, 9*cin_padded), row order (kh, kw, ci)."""
    _, _, cin, cout = w_hwio.shape
    wm = jnp.transpose(w_hwio, (3, 0, 1, 2))            # (Cout, 3, 3, Cin)
    if cin_padded > cin:
        wm = jnp.pad(wm, ((0, 0), (0, 0), (0, 0), (0, cin_padded - cin)))
    return jnp.reshape(wm, (cout, 9 * cin_padded))


# ---------------------------------------------------------------------------
# Fused backbone: conv+relu, conv+relu, maxpool, conv+relu in ONE pallas_call.
# ---------------------------------------------------------------------------
def fused_backbone(x_nchw, conv_params, images_per_block=2):
    """Returns NCHW activations after layers "1", "3", "6"."""
    (w0, b0), (w2, b2), (w5, b5) = conv_params
    n, cin, h_in, w_in = x_nchw.shape
    h_half, w_half = h_in // 2, w_in // 2
    p_full, p_half = h_in * w_in, h_half * w_half
    c1, c3, c6 = w0.shape[3], w2.shape[3], w5.shape[3]

    # TODO(synk): on v7x with very small N, set images_per_block=1 so the grid
    # spans both TensorCores (trades a little lane density for 2 cores).
    nb = max(1, min(images_per_block, n))       # images folded per grid block
    n_pad = -(-n // nb) * nb
    cin_p = -(-cin // 8) * 8                    # pad input channels to sublanes
    lb, lbh = nb * p_full, nb * p_half          # lane widths per block

    # Fold batch into the lane axis: (C, N*P), column = img*P + y*W + x.
    xr = jnp.reshape(x_nchw, (n, cin, p_full))
    if n_pad > n:
        xr = jnp.pad(xr, ((0, n_pad - n), (0, 0), (0, 0)))
    if cin_p > cin:
        xr = jnp.pad(xr, ((0, 0), (0, cin_p - cin), (0, 0)))
    x_folded = jnp.reshape(jnp.transpose(xr, (1, 0, 2)), (cin_p, n_pad * p_full))

    masks_full = _conv_boundary_masks(h_in, w_in, nb)        # (9, 1, lb)
    masks_half = _conv_boundary_masks(h_half, w_half, nb)    # (9, 1, lbh)
    sel = _pool_select_matrix(h_in, w_in, nb)                # (lb, lbh)

    w0m = _prep_im2col_weight(w0, cin_p)                     # (c1, 9*cin_p)
    w2m = _prep_im2col_weight(w2, c1)                        # (c3, 9*c1)
    w5m = _prep_im2col_weight(w5, c3)                        # (c6, 9*c3)
    b0c, b2c, b5c = (jnp.reshape(b, (-1, 1)) for b in (b0, b2, b5))

    sign = _roll_sign()

    def kernel(x_ref, mf_ref, mh_ref, sel_ref,
               w0_ref, b0_ref, w2_ref, b2_ref, w5_ref, b5_ref,
               o1_ref, o3_ref, o6_ref):
        def shifted(a, off):
            # out[:, col] = a[:, col + off] (cyclic; wrapped cols masked/unused)
            s = (-sign * off) % a.shape[-1]
            return a if s == 0 else pltpu.roll(a, s, axis=1)

        def conv3x3_relu(a, m_ref, w_ref, b_ref, row_w):
            # im2col via lane rolls + boundary masks, then ONE MXU dot.
            cols = []
            for kh in range(3):
                for kw in range(3):
                    off = (kh - 1) * row_w + (kw - 1)
                    cols.append(shifted(a, off) * m_ref[kh * 3 + kw])
            col = jnp.concatenate(cols, axis=0)              # (9*Cin, L)
            y = jnp.dot(w_ref[...], col, precision=_PRECISION,
                        preferred_element_type=jnp.float32)
            return jnp.maximum(y + b_ref[...], 0.0)          # bias+ReLU fused

        def maxpool2x2(a, row_w):
            # max over the 2x2 window anchored at every pixel (2 rolls + max),
            # then gather even/even anchors with one exact 0/1 dot.
            hmax = jnp.maximum(a, shifted(a, 1))
            vmax = jnp.maximum(hmax, shifted(hmax, row_w))
            return jnp.dot(vmax, sel_ref[...], precision=_PRECISION,
                           preferred_element_type=jnp.float32)

        a1 = conv3x3_relu(x_ref[...], mf_ref, w0_ref, b0_ref, w_in)   # "0"+"1"
        o1_ref[...] = a1
        a3 = conv3x3_relu(a1, mf_ref, w2_ref, b2_ref, w_in)           # "2"+"3"
        o3_ref[...] = a3
        a4 = maxpool2x2(a3, w_in)                                     # "4"
        o6_ref[...] = conv3x3_relu(a4, mh_ref, w5_ref, b5_ref, w_half)  # "5"+"6"

    const2 = lambda i: (0, 0)
    o1, o3, o6 = pl.pallas_call(
        kernel,
        out_shape=(
            jax.ShapeDtypeStruct((c1, n_pad * p_full), jnp.float32),
            jax.ShapeDtypeStruct((c3, n_pad * p_full), jnp.float32),
            jax.ShapeDtypeStruct((c6, n_pad * p_half), jnp.float32),
        ),
        grid=(n_pad // nb,),
        in_specs=[
            pl.BlockSpec((cin_p, lb), lambda i: (0, i)),
            pl.BlockSpec(masks_full.shape, lambda i: (0, 0, 0)),
            pl.BlockSpec(masks_half.shape, lambda i: (0, 0, 0)),
            pl.BlockSpec(sel.shape, const2),
            pl.BlockSpec(w0m.shape, const2),
            pl.BlockSpec(b0c.shape, const2),
            pl.BlockSpec(w2m.shape, const2),
            pl.BlockSpec(b2c.shape, const2),
            pl.BlockSpec(w5m.shape, const2),
            pl.BlockSpec(b5c.shape, const2),
        ],
        out_specs=(
            pl.BlockSpec((c1, lb), lambda i: (0, i)),
            pl.BlockSpec((c3, lb), lambda i: (0, i)),
            pl.BlockSpec((c6, lbh), lambda i: (0, i)),
        ),
        compiler_params=pltpu.CompilerParams(
            dimension_semantics=("parallel",)),
    )(x_folded, masks_full, masks_half, sel, w0m, b0c, w2m, b2c, w5m, b5c)

    def unfold(o, c, hh, ww):                 # (C, Npad*H*W) -> NCHW
        o = o[:, : n * hh * ww]
        return jnp.transpose(jnp.reshape(o, (c, n, hh, ww)), (1, 0, 2, 3))

    return {"1": unfold(o1, c1, h_in, w_in),
            "3": unfold(o3, c3, h_in, w_in),
            "6": unfold(o6, c6, h_half, w_half)}


# ---------------------------------------------------------------------------
# IntermediateLayerGetter — same semantics as the PyTorch module for this
# backbone: traverse layers in order, collect requested intermediate outputs.
# ---------------------------------------------------------------------------
class IntermediateLayerGetter:
    _TAPPED = ("1", "3", "6")   # layers the fused kernel exposes

    def __init__(self, features, layer_names):
        # features: ordered list of (name, layer_spec), mimicking
        #           model.features._modules.items()
        self.features = features
        self.layer_names = list(layer_names)
        self.outputs = []
        # TODO(synk): only the fixed DeepRare conv/relu/maxpool stack is fused;
        # arbitrary backbones / other tap points are not supported.
        unsupported = [nm for nm in self.layer_names if nm not in self._TAPPED]
        if unsupported:
            raise ValueError(f"unsupported intermediate layers: {unsupported}")
        convs = [layer for _, layer in features if layer[0] == "conv"]
        self._conv_params = [(w, b) for _, w, b in convs]

    def __call__(self, x_nchw):
        inter = fused_backbone(x_nchw, self._conv_params)
        # collect in layer-traversal order, exactly like the PyTorch forward
        self.outputs = [inter[name] for name, _ in self.features
                        if name in self.layer_names]
        return self.outputs


# ---------------------------------------------------------------------------
# Deterministic synthetic backbone parameters + plain-JAX reference check.
# ---------------------------------------------------------------------------
def make_features(key):
    def conv_params(k, cin, cout):
        kw_, kb_ = jax.random.split(k)
        w = 0.1 * jax.random.normal(kw_, (3, 3, cin, cout), jnp.float32)  # HWIO
        b = 0.1 * jax.random.normal(kb_, (cout,), jnp.float32)
        return w, b

    k0, k2, k5 = jax.random.split(key, 3)
    w0, b0 = conv_params(k0, 3, 8)
    w2, b2 = conv_params(k2, 8, 8)
    w5, b5 = conv_params(k5, 8, 16)
    return [
        ("0", ("conv", w0, b0)),
        ("1", ("relu",)),
        ("2", ("conv", w2, b2)),
        ("3", ("relu",)),
        ("4", ("maxpool",)),
        ("5", ("conv", w5, b5)),
        ("6", ("relu",)),
    ]


def reference_forward(features, layer_names, x_nchw):
    x = jnp.transpose(x_nchw, (0, 2, 3, 1))       # NHWC for lax.conv
    outs = []
    for name, layer in features:
        kind = layer[0]
        if kind == "conv":
            _, w, b = layer
            x = lax.conv_general_dilated(
                x, w, window_strides=(1, 1), padding="SAME",
                dimension_numbers=("NHWC", "HWIO", "NHWC"),
                precision=_PRECISION) + b
        elif kind == "relu":
            x = jnp.maximum(x, 0.0)
        elif kind == "maxpool":
            nb_, hh, ww, cc = x.shape
            x = x.reshape(nb_, hh // 2, 2, ww // 2, 2, cc).max(axis=(2, 4))
        if name in layer_names:
            outs.append(jnp.transpose(x, (0, 3, 1, 2)))   # NCHW
    return outs


if __name__ == "__main__":
    key = jax.random.PRNGKey(0)
    k_param, k_x = jax.random.split(key)

    features = make_features(k_param)
    layer_names = ["1", "3", "6"]

    x = jax.random.normal(k_x, (2, 3, 16, 16), jnp.float32)   # NCHW input

    getter = IntermediateLayerGetter(features, layer_names)
    outs = getter(x)
    outs = [jax.block_until_ready(o) for o in outs]

    refs = reference_forward(features, layer_names, x)
    assert len(outs) == len(refs) == len(layer_names)
    for o, r in zip(outs, refs):
        assert o.shape == r.shape and o.dtype == r.dtype
        assert jnp.allclose(o, r, atol=1e-4, rtol=1e-4), "mismatch vs reference"

    print("KERNEL_OK")
</pallas_src>

<mosaic_0001>
module attributes {stable_mosaic.version = 11 : i64} {
  func.func @probe(%arg0: memref<8x128xf32, #tpu.memory_space<vmem>>, %arg1: memref<8x128xf32, #tpu.memory_space<vmem>>) attributes {dimension_semantics = [], scalar_prefetch = 0 : i64, scratch_operands = 0 : i64, tpu.core_type = #tpu.core_type<tc>} {
    %c0 = arith.constant 0 : index
    %c0_0 = arith.constant 0 : index
    %0 = vector.load %arg0[%c0, %c0_0] : memref<8x128xf32, #tpu.memory_space<vmem>>, vector<8x128xf32>
    %c1_i32 = arith.constant 1 : i32
    %1 = tpu.dynamic_rotate %0 by %c1_i32 dim 1 : vector<8x128xf32>, i32 -> vector<8x128xf32>
    %c0_1 = arith.constant 0 : index
    %c0_2 = arith.constant 0 : index
    %2 = vector.load %arg1[%c0_1, %c0_2] : memref<8x128xf32, #tpu.memory_space<vmem>>, vector<8x128xf32>
    tpu.vector_store %arg1[%c0_1, %c0_2], %1 {strides = array<i32>} : memref<8x128xf32, #tpu.memory_space<vmem>>, vector<8x128xf32>,
    return
  }
}

</mosaic_0001>

<llo_original>
// kernel: tpu_custom_call.1
$region0: #{tpu_custom_call.1}
  #allocation0 [shape = 'u32[]', space=smem, size = 0x4, offset = 0x4, fixed_abs, tag = 'smem constant byte address 0x4 - core index']
  #allocation1 [shape = 'u32[72,128]{1,0:T(1,128)}', space=vmem, size = 0x9000, scoped, tag = 'internal scratch']
  %s0 = inlined_call_operand.hbm [shape: f32[8,128], index: 0, kind: input, shape index: {}]
  %s1 = inlined_call_operand.hbm [shape: f32[8,128], index: 1, kind: output, shape index: {}]
  %s2 = sld [smem:[#allocation0]]
  $region18: #{tpu_custom_call.1} parent=0
    _
  %s4 = ssub.s32 1, %s2
  %s5 = scalar_select 0, %s4, %s2
  $region1: #{tpu_custom_call.1} parent=0
    #allocation2 [shape = 'u8[4096]{0}', space=vmem, size = 0x1000, scoped, tag = 'input window, operand 0, single buffered']
    #allocation3 [shape = 's32[1]{0}', space=sflag, size = 0x4, scoped, tag = 'scoped memory for tpu_custom_call.1']
    #allocation4 [shape = 's32[1]{0}', space=sflag, size = 0x4, scoped, tag = 'scoped memory for tpu_custom_call.1']
    #allocation5 [shape = 'u8[4096]{0}', space=vmem, size = 0x1000, scoped, tag = 'output window, operand 0, single buffered']
    %6 = vsyncpa [#allocation3], 0
    %7 = vsyncpa [#allocation4], 0
    // Predicated region
    $region2: #{tpu_custom_call.1} parent=1 // pred_check
      _
    $region3: #{tpu_custom_call.1} parent=1 // pred_check_branch
      %9 = sbr.rel (0) target = $region5
    $region4: #{tpu_custom_call.1} parent=1 // pred_region
      %11 = vsyncadd [#allocation3], 0
      %s13 = sshll.u32 %s0, 4
      %s14 = int_to_ptr.hbm [resolvable:$true] %s13
      %s15 = sshll.u32 [#allocation2], 4
      %s16 = int_to_ptr.vmem [resolvable:$true] %s15
      %18 = dma.hbm_to_vmem [thread:$0]  %s14, 128, %s16, [#allocation3]
    $region5: #{tpu_custom_call.1} parent=1 // pred_fallthru
      _
    // Predicated region
    $region6: #{tpu_custom_call.1} parent=1 // pred_check
      _
    $region7: #{tpu_custom_call.1} parent=1 // pred_check_branch
      %20 = sbr.rel (0) target = $region9
    $region8: #{tpu_custom_call.1} parent=1 // pred_region
      %22 = dma.done [#allocation3], 128
    $region9: #{tpu_custom_call.1} parent=1 // pred_fallthru
      _
    %v23 = vld [vmem:[#allocation2] sm:$0xff]
    %24 = vrot.lane.b32.xlu0 %v23, 1
    %v25 = vpop.permute.xlu0 %24
    %26 = vst [vmem:[#allocation5] sm:$0xff] %v25
    // Predicated region
    $region10: #{tpu_custom_call.1} parent=1 // pred_check
      _
    $region11: #{tpu_custom_call.1} parent=1 // pred_check_branch
      %28 = sbr.rel (0) target = $region13
    $region12: #{tpu_custom_call.1} parent=1 // pred_region
      %30 = vsyncadd [#allocation4], 0
      %s32 = sshll.u32 [#allocation5], 4
      %s33 = int_to_ptr.vmem [resolvable:$true] %s32
      %s34 = sshll.u32 %s1, 4
      %s35 = int_to_ptr.hbm [resolvable:$true] %s34
      %37 = dma.vmem_to_hbm [thread:$0]  %s33, 128, %s35, [#allocation4]
    $region13: #{tpu_custom_call.1} parent=1 // pred_fallthru
      _
    // Predicated region
    $region14: #{tpu_custom_call.1} parent=1 // pred_check
      _
    $region15: #{tpu_custom_call.1} parent=1 // pred_check_branch
      %39 = sbr.rel (0) target = $region17
    $region16: #{tpu_custom_call.1} parent=1 // pred_region
      %41 = dma.done [#allocation4], 128
    $region17: #{tpu_custom_call.1} parent=1 // pred_fallthru
      _
    %42 = vsyncpa [#allocation3], 1
    %43 = vsyncpa [#allocation4], 1

</llo_original>
